<compile_context>
chip_gen: v5e
topology: v5e:2x2
jax: 0.10.0
libtpu: 0.0.40
codegen_flags: <defaults>
</compile_context>

<pallas_src>
import functools
import math

import jax
import jax.numpy as jnp
from jax.experimental import pallas as pl
from jax.experimental.pallas import tpu as pltpu

_BATCH_TILE = 256  # MXU-native LHS tile height on v6e/v7x (use 128 if tuning for v5e).


def _round_up(n, m):
    return ((n + m - 1) // m) * m


# ----------------------------------------------------------------------------
# Fused Pallas kernel: entire P_net forward in one body (one batch tile).
# ----------------------------------------------------------------------------
def _pnet_fused_kernel(x_ref, w1_ref, b1_ref, w2_ref, b2_ref, wh_ref, bh_ref,
                       o_ref, *, cont_dim, sig_lanes):
    # lin1 + (eval-mode dropout == identity) + relu.
    # bf16 MXU inputs, f32 accumulation; elementwise math in f32.
    x = x_ref[...]
    h1 = jnp.dot(x.astype(w1_ref.dtype), w1_ref[...],
                 preferred_element_type=jnp.float32)
    h1 = jnp.maximum(h1 + b1_ref[...].astype(jnp.float32), 0.0)

    # lin2 (no activation).
    h2 = jnp.dot(h1.astype(w2_ref.dtype), w2_ref[...],
                 preferred_element_type=jnp.float32)
    h2 = h2 + b2_ref[...].astype(jnp.float32)

    # All output heads (lin3 ++ cat heads) as one lane-dense matmul.
    y = jnp.dot(h2.astype(wh_ref.dtype), wh_ref[...],
                preferred_element_type=jnp.float32)
    y = y + bh_ref[...].astype(jnp.float32)

    if cont_dim > 0:
        # Sigmoid + iota mask only over the first `sig_lanes` (128-multiple)
        # columns that contain lin3 outputs; cat-logit lanes pass through
        # untouched so the EUP/VPU epilogue stays O(1) vregs as heads grow.
        sig = y[:, :sig_lanes]
        col = jax.lax.broadcasted_iota(jnp.int32, sig.shape, 1)
        sig = jnp.where(col < cont_dim, jax.nn.sigmoid(sig), sig)
        o_ref[:, :sig_lanes] = sig.astype(o_ref.dtype)
        if sig_lanes < o_ref.shape[1]:
            o_ref[:, sig_lanes:] = y[:, sig_lanes:].astype(o_ref.dtype)
    else:
        o_ref[...] = y.astype(o_ref.dtype)


def pnet_fused_forward(x, w1, b1, w2, b2, wh_pad, bh_pad, *, cont_dim, tile_b):
    """x: (B, z_dim) with B % tile_b == 0; wh_pad: (N, d_pad). Returns (B, d_pad) f32."""
    B, z_dim = x.shape
    N = w1.shape[1]
    d_pad = wh_pad.shape[1]
    assert B % tile_b == 0
    sig_lanes = min(_round_up(max(cont_dim, 1), 128), d_pad)

    kernel = functools.partial(_pnet_fused_kernel, cont_dim=cont_dim,
                               sig_lanes=sig_lanes)

    nbytes = lambda a: a.size * a.dtype.itemsize
    cost = pl.CostEstimate(
        flops=2 * B * (z_dim * N + N * N + N * d_pad),
        transcendentals=B * (sig_lanes if cont_dim > 0 else 0),
        bytes_accessed=sum(nbytes(a) for a in (x, w1, b1, w2, b2, wh_pad, bh_pad))
        + B * d_pad * 4,
    )

    const = lambda i: (0, 0)  # weights/biases: one block, never re-DMA'd per batch tile
    grid_spec = pltpu.PrefetchScalarGridSpec(
        num_scalar_prefetch=0,
        grid=(B // tile_b,),
        in_specs=[
            pl.BlockSpec((tile_b, z_dim), lambda i: (i, 0)),  # x advances with grid
            pl.BlockSpec((z_dim, N), const),
            pl.BlockSpec((1, N), const),
            pl.BlockSpec((N, N), const),
            pl.BlockSpec((1, N), const),
            pl.BlockSpec((N, d_pad), const),
            pl.BlockSpec((1, d_pad), const),
        ],
        out_specs=pl.BlockSpec((tile_b, d_pad), lambda i: (i, 0)),
    )

    # TODO(synk): before scaling N past ~2900 on v7x (64 MiB VMEM), add a K/N
    # reduction grid ((tk, tn) weight tiles + f32 VMEM accumulator, reduction
    # axis "arbitrary") and set vmem_limit_bytes; single-block weights are fine
    # at these toy widths and within v5e/v6e's 128 MiB.
    return pl.pallas_call(
        kernel,
        out_shape=jax.ShapeDtypeStruct((B, d_pad), jnp.float32),
        grid_spec=grid_spec,
        compiler_params=pltpu.CompilerParams(
            dimension_semantics=("parallel",)),  # batch tiles shard across v7x's 2 TCs
        cost_estimate=cost,
    )(x, w1, b1, w2, b2, wh_pad, bh_pad)


# ----------------------------------------------------------------------------
# P_net parameters + forward (concat / head-split glue in plain JAX).
# ----------------------------------------------------------------------------
def _init_linear(key, fan_in, fan_out, weight_dtype):
    # Mirrors torch.nn.Linear default init: U(-1/sqrt(fan_in), 1/sqrt(fan_in)).
    kw, kb = jax.random.split(key)
    bound = 1.0 / math.sqrt(fan_in)
    w = jax.random.uniform(kw, (fan_in, fan_out), jnp.float32, -bound, bound)
    b = jax.random.uniform(kb, (1, fan_out), jnp.float32, -bound, bound)
    # Weights feed the MXU -> store bf16 (2x throughput, half DMA/VMEM bytes);
    # biases stay f32 (added on the VPU in f32).
    return w.astype(weight_dtype), b


class PNetPallas:
    def __init__(self, key, N, z_dim, cont_dim, cats_out,
                 weight_dtype=jnp.bfloat16):
        keys = jax.random.split(key, 3 + len(cats_out))
        self.cont_dim = cont_dim
        self.cats_out = list(cats_out)
        self.weight_dtype = weight_dtype
        self.lin1 = _init_linear(keys[0], z_dim, N, weight_dtype)
        self.lin2 = _init_linear(keys[1], N, N, weight_dtype)
        self.lin3 = _init_linear(keys[2], N, cont_dim, weight_dtype)
        self.cats = [_init_linear(keys[3 + i], N, c, weight_dtype)
                     for i, c in enumerate(cats_out)]

        # Concatenate lin3 ++ all cat heads into one lane-padded (multiple of 128)
        # weight/bias so the only HBM store is a single lane-dense slab.
        head_ws = [self.lin3[0]] + [wc for (wc, _) in self.cats]
        head_bs = [self.lin3[1]] + [bc for (_, bc) in self.cats]
        wh = jnp.concatenate(head_ws, axis=1)
        bh = jnp.concatenate(head_bs, axis=1)
        self.d_head = wh.shape[1]
        self.d_pad = _round_up(max(self.d_head, 1), 128)
        pad = self.d_pad - self.d_head
        self.wh_pad = jnp.pad(wh, ((0, 0), (0, pad)))
        self.bh_pad = jnp.pad(bh, ((0, 0), (0, pad)))

    def forward_packed(self, x):
        """Fused forward; returns the (B, d_pad) lane-dense head slab.
        Columns [0, cont_dim) = sigmoid(lin3); [cont_dim, d_head) = packed cat
        logits; the rest is zero padding. Prefer this for perf-critical callers."""
        B = x.shape[0]
        if B <= _BATCH_TILE:
            tile_b, b_pad = B, B            # single full-batch block: no pad/strip
        else:
            tile_b = _BATCH_TILE            # MXU-native tile height, parallel grid
            b_pad = _round_up(B, tile_b)
        x_in = x if b_pad == B else jnp.pad(x, ((0, b_pad - B), (0, 0)))
        w1, b1 = self.lin1
        w2, b2 = self.lin2
        y = pnet_fused_forward(x_in, w1, b1, w2, b2, self.wh_pad, self.bh_pad,
                               cont_dim=self.cont_dim, tile_b=tile_b)
        return y if b_pad == B else y[:B]

    def __call__(self, x):
        # TODO(synk): training-mode dropout (p=0.25 with 1/(1-p) scaling via
        # pltpu.prng_random_bits mask) is not implemented; eval-mode only.
        y = self.forward_packed(x)
        out_cont = y[:, :self.cont_dim]
        # API-parity split into per-head logits (static offsets). Perf-critical
        # consumers should use forward_packed() to keep the lane-dense slab intact.
        cat_outs = []
        off = self.cont_dim
        for c in self.cats_out:
            cat_outs.append(y[:, off:off + c])
            off += c
        return out_cont, cat_outs


# ----------------------------------------------------------------------------
# Example run
# ----------------------------------------------------------------------------
if __name__ == "__main__":
    key = jax.random.PRNGKey(0)
    k_param, k_x = jax.random.split(key)

    # Small shapes consistent with the module's constructor.
    B, z_dim, N, cont_dim = 8, 8, 32, 4
    cats_out = [4, 8]

    model = PNetPallas(k_param, N=N, z_dim=z_dim, cont_dim=cont_dim,
                       cats_out=cats_out, weight_dtype=jnp.bfloat16)

    x = jax.random.normal(k_x, (B, z_dim), dtype=jnp.float32)

    out_cont, cat_outs = model(x)
    jax.block_until_ready(out_cont)
    for c in cat_outs:
        jax.block_until_ready(c)

    # Reference in plain JAX mirroring the kernel numerics exactly
    # (bf16 MXU inputs, f32 accumulation, f32 bias/relu/sigmoid).
    def ref_forward(x):
        wd = model.weight_dtype
        w1, b1 = model.lin1
        h1 = jnp.maximum(
            jnp.dot(x.astype(wd), w1, preferred_element_type=jnp.float32) + b1, 0.0)
        w2, b2 = model.lin2
        h2 = jnp.dot(h1.astype(wd), w2, preferred_element_type=jnp.float32) + b2
        w3, b3 = model.lin3
        oc = jax.nn.sigmoid(
            jnp.dot(h2.astype(wd), w3, preferred_element_type=jnp.float32) + b3)
        cs = [jnp.dot(h2.astype(wd), wc, preferred_element_type=jnp.float32) + bc
              for (wc, bc) in model.cats]
        return oc, cs

    oc_ref, cs_ref = ref_forward(x)
    assert jnp.allclose(out_cont, oc_ref, atol=1e-4, rtol=1e-4)
    for c, cr in zip(cat_outs, cs_ref):
        assert jnp.allclose(c, cr, atol=1e-4, rtol=1e-4)

    assert out_cont.shape == (B, cont_dim)
    assert [c.shape for c in cat_outs] == [(B, c) for c in cats_out]

    print("KERNEL_OK")
</pallas_src>

<mosaic_0001>
module attributes {stable_mosaic.version = 11 : i64} {
  func.func @_pnet_fused_kernel(%arg0: i32, %arg1: memref<8x8xf32, #tpu.memory_space<vmem>>, %arg2: memref<8x32xbf16, #tpu.memory_space<vmem>>, %arg3: memref<1x32xf32, #tpu.memory_space<vmem>>, %arg4: memref<32x32xbf16, #tpu.memory_space<vmem>>, %arg5: memref<1x32xf32, #tpu.memory_space<vmem>>, %arg6: memref<32x128xbf16, #tpu.memory_space<vmem>>, %arg7: memref<1x128xf32, #tpu.memory_space<vmem>>, %arg8: memref<8x128xf32, #tpu.memory_space<vmem>>) attributes {dimension_semantics = [#tpu.dimension_semantics<parallel>], iteration_bounds = array<i64: 1>, scalar_prefetch = 0 : i64, scratch_operands = 0 : i64, tpu.core_type = #tpu.core_type<tc>, window_params = [{transform_indices = @transform_0, window_bounds = array<i64: 8, 8>}, {pipeline_mode = #tpu.pipeline_mode<synchronous>, transform_indices = @transform_1, window_bounds = array<i64: 8, 32>}, {pipeline_mode = #tpu.pipeline_mode<synchronous>, transform_indices = @transform_2, window_bounds = array<i64: 1, 32>}, {pipeline_mode = #tpu.pipeline_mode<synchronous>, transform_indices = @transform_3, window_bounds = array<i64: 32, 32>}, {pipeline_mode = #tpu.pipeline_mode<synchronous>, transform_indices = @transform_4, window_bounds = array<i64: 1, 32>}, {pipeline_mode = #tpu.pipeline_mode<synchronous>, transform_indices = @transform_5, window_bounds = array<i64: 32, 128>}, {pipeline_mode = #tpu.pipeline_mode<synchronous>, transform_indices = @transform_6, window_bounds = array<i64: 1, 128>}, {transform_indices = @transform_7, window_bounds = array<i64: 8, 128>}]} {
    %c0 = arith.constant 0 : index
    %c0_0 = arith.constant 0 : index
    %0 = vector.load %arg1[%c0, %c0_0] : memref<8x8xf32, #tpu.memory_space<vmem>>, vector<8x8xf32>
    %1 = arith.truncf %0 : vector<8x8xf32> to vector<8x8xbf16>
    %c0_1 = arith.constant 0 : index
    %c0_2 = arith.constant 0 : index
    %2 = vector.load %arg2[%c0_1, %c0_2] : memref<8x32xbf16, #tpu.memory_space<vmem>>, vector<8x32xbf16>
    %cst = arith.constant dense<0.000000e+00> : vector<8x32xf32>
    %3 = tpu.matmul %1, %2, %cst {dimension_numbers = #tpu.dot_dimension_numbers<[1], [0], [0], [1], [0, 0, 1, 1], [], []>} : vector<8x8xbf16>, vector<8x32xbf16>, vector<8x32xf32> -> vector<8x32xf32>
    %c0_3 = arith.constant 0 : index
    %c0_4 = arith.constant 0 : index
    %4 = vector.load %arg3[%c0_3, %c0_4] : memref<1x32xf32, #tpu.memory_space<vmem>>, vector<1x32xf32>
    %5 = vector.broadcast %4 : vector<1x32xf32> to vector<8x32xf32>
    %6 = arith.addf %3, %5 : vector<8x32xf32>
    %cst_5 = arith.constant 0.000000e+00 : f32
    %7 = vector.broadcast %cst_5 : f32 to vector<8x32xf32>
    %8 = arith.maximumf %6, %7 : vector<8x32xf32>
    %9 = arith.truncf %8 : vector<8x32xf32> to vector<8x32xbf16>
    %c0_6 = arith.constant 0 : index
    %c0_7 = arith.constant 0 : index
    %10 = vector.load %arg4[%c0_6, %c0_7] : memref<32x32xbf16, #tpu.memory_space<vmem>>, vector<32x32xbf16>
    %cst_8 = arith.constant dense<0.000000e+00> : vector<8x32xf32>
    %11 = tpu.matmul %9, %10, %cst_8 {dimension_numbers = #tpu.dot_dimension_numbers<[1], [0], [0], [1], [0, 0, 1, 1], [], []>} : vector<8x32xbf16>, vector<32x32xbf16>, vector<8x32xf32> -> vector<8x32xf32>
    %c0_9 = arith.constant 0 : index
    %c0_10 = arith.constant 0 : index
    %12 = vector.load %arg5[%c0_9, %c0_10] : memref<1x32xf32, #tpu.memory_space<vmem>>, vector<1x32xf32>
    %13 = vector.broadcast %12 : vector<1x32xf32> to vector<8x32xf32>
    %14 = arith.addf %11, %13 : vector<8x32xf32>
    %15 = arith.truncf %14 : vector<8x32xf32> to vector<8x32xbf16>
    %c0_11 = arith.constant 0 : index
    %c0_12 = arith.constant 0 : index
    %16 = vector.load %arg6[%c0_11, %c0_12] : memref<32x128xbf16, #tpu.memory_space<vmem>>, vector<32x128xbf16>
    %cst_13 = arith.constant dense<0.000000e+00> : vector<8x128xf32>
    %17 = tpu.matmul %15, %16, %cst_13 {dimension_numbers = #tpu.dot_dimension_numbers<[1], [0], [0], [1], [0, 0, 1, 1], [], []>} : vector<8x32xbf16>, vector<32x128xbf16>, vector<8x128xf32> -> vector<8x128xf32>
    %c0_14 = arith.constant 0 : index
    %c0_15 = arith.constant 0 : index
    %18 = vector.load %arg7[%c0_14, %c0_15] : memref<1x128xf32, #tpu.memory_space<vmem>>, vector<1x128xf32>
    %19 = vector.broadcast %18 : vector<1x128xf32> to vector<8x128xf32>
    %20 = arith.addf %17, %19 : vector<8x128xf32>
    %21 = tpu.iota {dimensions = array<i32: 1>} : vector<8x128xi32>
    %c4_i32 = arith.constant 4 : i32
    %22 = vector.broadcast %c4_i32 : i32 to vector<8x128xi32>
    %23 = arith.cmpi slt, %21, %22 : vector<8x128xi32>
    %24 = arith.negf %20 : vector<8x128xf32>
    %25 = math.exp %24 : vector<8x128xf32>
    %cst_16 = arith.constant 1.000000e+00 : f32
    %26 = vector.broadcast %cst_16 : f32 to vector<8x128xf32>
    %27 = arith.addf %26, %25 : vector<8x128xf32>
    %28 = arith.divf %26, %27 : vector<8x128xf32>
    %29 = arith.select %23, %28, %20 : vector<8x128xi1>, vector<8x128xf32>
    %c0_17 = arith.constant 0 : index
    %c0_18 = arith.constant 0 : index
    %30 = vector.load %arg8[%c0_17, %c0_18] : memref<8x128xf32, #tpu.memory_space<vmem>>, vector<8x128xf32>
    tpu.vector_store %arg8[%c0_17, %c0_18], %29 {strides = array<i32>} : memref<8x128xf32, #tpu.memory_space<vmem>>, vector<8x128xf32>,
    return
  }
  func.func @transform_0(%arg0: i32) -> (i32, i32) {
    %c0_i32 = arith.constant 0 : i32
    %c0_i32_0 = arith.constant 0 : i32
    return %arg0, %c0_i32 : i32, i32
  }
  func.func @transform_1(%arg0: i32) -> (i32, i32) {
    %c0_i32 = arith.constant 0 : i32
    %c0_i32_0 = arith.constant 0 : i32
    %c0_i32_1 = arith.constant 0 : i32
    return %c0_i32, %c0_i32_0 : i32, i32
  }
  func.func @transform_2(%arg0: i32) -> (i32, i32) {
    %c0_i32 = arith.constant 0 : i32
    %c0_i32_0 = arith.constant 0 : i32
    %c0_i32_1 = arith.constant 0 : i32
    return %c0_i32, %c0_i32_0 : i32, i32
  }
  func.func @transform_3(%arg0: i32) -> (i32, i32) {
    %c0_i32 = arith.constant 0 : i32
    %c0_i32_0 = arith.constant 0 : i32
    %c0_i32_1 = arith.constant 0 : i32
    return %c0_i32, %c0_i32_0 : i32, i32
  }
  func.func @transform_4(%arg0: i32) -> (i32, i32) {
    %c0_i32 = arith.constant 0 : i32
    %c0_i32_0 = arith.constant 0 : i32
    %c0_i32_1 = arith.constant 0 : i32
    return %c0_i32, %c0_i32_0 : i32, i32
  }
  func.func @transform_5(%arg0: i32) -> (i32, i32) {
    %c0_i32 = arith.constant 0 : i32
    %c0_i32_0 = arith.constant 0 : i32
    %c0_i32_1 = arith.constant 0 : i32
    return %c0_i32, %c0_i32_0 : i32, i32
  }
  func.func @transform_6(%arg0: i32) -> (i32, i32) {
    %c0_i32 = arith.constant 0 : i32
    %c0_i32_0 = arith.constant 0 : i32
    %c0_i32_1 = arith.constant 0 : i32
    return %c0_i32, %c0_i32_0 : i32, i32
  }
  func.func @transform_7(%arg0: i32) -> (i32, i32) {
    %c0_i32 = arith.constant 0 : i32
    %c0_i32_0 = arith.constant 0 : i32
    return %arg0, %c0_i32 : i32, i32
  }
}

</mosaic_0001>

<llo_original>
// kernel: tpu_custom_call.1
$region0: #{tpu_custom_call.1}
  #allocation0 [shape = 'u32[]', space=smem, size = 0x4, offset = 0x4, fixed_abs, tag = 'smem constant byte address 0x4 - core index']
  #allocation1 [shape = 'u32[72,128]{1,0:T(1,128)}', space=vmem, size = 0x9000, scoped, tag = 'internal scratch']
  %s0 = inlined_call_operand.hbm [shape: f32[8,8], index: 0, kind: input, shape index: {}]
  %s1 = inlined_call_operand.hbm [shape: bf16[8,32], index: 1, kind: input, shape index: {}]
  %s2 = inlined_call_operand.vmem [shape: f32[1,32], index: 2, kind: input, shape index: {}]
  %s3 = inlined_call_operand.hbm [shape: bf16[32,32], index: 3, kind: input, shape index: {}]
  %s4 = inlined_call_operand.vmem [shape: f32[1,32], index: 4, kind: input, shape index: {}]
  %s5 = inlined_call_operand.hbm [shape: bf16[32,128], index: 5, kind: input, shape index: {}]
  %s6 = inlined_call_operand.vmem [shape: f32[1,128], index: 6, kind: input, shape index: {}]
  %s7 = inlined_call_operand.hbm [shape: f32[8,128], index: 7, kind: output, shape index: {}]
  %s8 = sld [smem:[#allocation0]]
  $region54: #{tpu_custom_call.1} parent=0
    _
  %s10 = ssub.s32 1, %s8
  %s11 = scalar_select 0, %s10, %s8
  $region1: #{tpu_custom_call.1} parent=0
    #allocation2 [shape = 'u8[4096]{0}', space=vmem, size = 0x1000, scoped, tag = 'input window, operand 0, single buffered']
    #allocation3 [shape = 's32[1]{0}', space=sflag, size = 0x4, scoped, tag = 'scoped memory for tpu_custom_call.1']
    #allocation4 [shape = 's32[1]{0}', space=sflag, size = 0x4, scoped, tag = 'scoped memory for tpu_custom_call.1']
    #allocation5 [shape = 'u8[2048]{0}', space=vmem, size = 0x800, scoped, tag = 'input window, operand 1, single buffered']
    #allocation6 [shape = 's32[1]{0}', space=sflag, size = 0x4, scoped, tag = 'scoped memory for tpu_custom_call.1']
    #allocation7 [shape = 'u8[8192]{0}', space=vmem, size = 0x2000, scoped, tag = 'input window, operand 3, single buffered']
    #allocation8 [shape = 'u8[8192]{0}', space=vmem, size = 0x2000, scoped, tag = 'input window, operand 5, single buffered']
    #allocation9 [shape = 's32[1]{0}', space=sflag, size = 0x4, scoped, tag = 'scoped memory for tpu_custom_call.1']
    #allocation10 [shape = 'u8[4096]{0}', space=vmem, size = 0x1000, scoped, tag = 'output window, operand 0, single buffered']
    %12 = vsyncpa [#allocation3], 0
    %13 = vsyncpa [#allocation6], 0
    %14 = vsyncpa [#allocation9], 0
    %15 = vsyncpa [#allocation4], 0
    // Predicated region
    $region2: #{tpu_custom_call.1} parent=1 // pred_check
      _
    $region3: #{tpu_custom_call.1} parent=1 // pred_check_branch
      %17 = sbr.rel (0) target = $region5
    $region4: #{tpu_custom_call.1} parent=1 // pred_region
      %19 = vsyncadd [#allocation3], 0
      %s21 = sshll.u32 %s0, 4
      %s22 = int_to_ptr.hbm [resolvable:$true] %s21
      %s23 = sshll.u32 [#allocation2], 4
      %s24 = int_to_ptr.vmem [resolvable:$true] %s23
      %26 = dma.hbm_to_vmem [thread:$0]  %s22, 128, %s24, [#allocation3]
    $region5: #{tpu_custom_call.1} parent=1 // pred_fallthru
      _
    // Predicated region
    $region6: #{tpu_custom_call.1} parent=1 // pred_check
      _
    $region7: #{tpu_custom_call.1} parent=1 // pred_check_branch
      %28 = sbr.rel (0) target = $region9
    $region8: #{tpu_custom_call.1} parent=1 // pred_region
      %30 = vsyncadd [#allocation6], 0
      %s32 = sshll.u32 %s1, 4
      %s33 = int_to_ptr.hbm [resolvable:$true] %s32
      %s34 = sshll.u32 [#allocation5], 4
      %s35 = int_to_ptr.vmem [resolvable:$true] %s34
      %37 = dma.hbm_to_vmem [thread:$0]  %s33, 64, %s35, [#allocation6]
    $region9: #{tpu_custom_call.1} parent=1 // pred_fallthru
      _
    // Predicated region
    $region10: #{tpu_custom_call.1} parent=1 // pred_check
      _
    $region11: #{tpu_custom_call.1} parent=1 // pred_check_branch
      %39 = sbr.rel (0) target = $region13
    $region12: #{tpu_custom_call.1} parent=1 // pred_region
      _
    $region13: #{tpu_custom_call.1} parent=1 // pred_fallthru
      _
    // Predicated region
    $region14: #{tpu_custom_call.1} parent=1 // pred_check
      _
    $region15: #{tpu_custom_call.1} parent=1 // pred_check_branch
      %41 = sbr.rel (0) target = $region17
    $region16: #{tpu_custom_call.1} parent=1 // pred_region
      %43 = vsyncadd [#allocation6], 0
      %s44 = sshll.u32 %s3, 4
      %s45 = int_to_ptr.hbm [resolvable:$true] %s44
      %s46 = sshll.u32 [#allocation7], 4
      %s47 = int_to_ptr.vmem [resolvable:$true] %s46
      %52 = dma.hbm_to_vmem [thread:$0]  %s45, 256, %s47, [#allocation6], 64, 64, 4
    $region17: #{tpu_custom_call.1} parent=1 // pred_fallthru
      _
    // Predicated region
    $region18: #{tpu_custom_call.1} parent=1 // pred_check
      _
    $region19: #{tpu_custom_call.1} parent=1 // pred_check_branch
      %54 = sbr.rel (0) target = $region21
    $region20: #{tpu_custom_call.1} parent=1 // pred_region
      _
    $region21: #{tpu_custom_call.1} parent=1 // pred_fallthru
      _
    // Predicated region
    $region22: #{tpu_custom_call.1} parent=1 // pred_check
      _
    $region23: #{tpu_custom_call.1} parent=1 // pred_check_branch
      %56 = sbr.rel (0) target = $region25
    $region24: #{tpu_custom_call.1} parent=1 // pred_region
      %58 = vsyncadd [#allocation9], 0
      %s59 = sshll.u32 %s5, 4
      %s60 = int_to_ptr.hbm [resolvable:$true] %s59
      %s61 = sshll.u32 [#allocation8], 4
      %s62 = int_to_ptr.vmem [resolvable:$true] %s61
      %67 = dma.hbm_to_vmem [thread:$0]  %s60, 256, %s62, [#allocation9], 64, 64, 4
    $region25: #{tpu_custom_call.1} parent=1 // pred_fallthru
      _
    // Predicated region
    $region26: #{tpu_custom_call.1} parent=1 // pred_check
      _
    $region27: #{tpu_custom_call.1} parent=1 // pred_check_branch
      %69 = sbr.rel (0) target = $region29
    $region28: #{tpu_custom_call.1} parent=1 // pred_region
      _
    $region29: #{tpu_custom_call.1} parent=1 // pred_fallthru
      _
    // Predicated region
    $region30: #{tpu_custom_call.1} parent=1 // pred_check
      _
    $region31: #{tpu_custom_call.1} parent=1 // pred_check_branch
      %71 = sbr.rel (0) target = $region33
    $region32: #{tpu_custom_call.1} parent=1 // pred_region
      %73 = dma.done [#allocation3], 128
    $region33: #{tpu_custom_call.1} parent=1 // pred_fallthru
      _
    // Predicated region
    $region34: #{tpu_custom_call.1} parent=1 // pred_check
      _
    $region35: #{tpu_custom_call.1} parent=1 // pred_check_branch
      %75 = sbr.rel (0) target = $region37
    $region36: #{tpu_custom_call.1} parent=1 // pred_region
      %77 = dma.done [#allocation6], 64
    $region37: #{tpu_custom_call.1} parent=1 // pred_fallthru
      _
    // Predicated region
    $region38: #{tpu_custom_call.1} parent=1 // pred_check
      _
    $region39: #{tpu_custom_call.1} parent=1 // pred_check_branch
      %79 = sbr.rel (0) target = $region41
    $region40: #{tpu_custom_call.1} parent=1 // pred_region
      %81 = dma.done [#allocation6], 256
    $region41: #{tpu_custom_call.1} parent=1 // pred_fallthru
      _
    // Predicated region
    $region42: #{tpu_custom_call.1} parent=1 // pred_check
      _
    $region43: #{tpu_custom_call.1} parent=1 // pred_check_branch
      %83 = sbr.rel (0) target = $region45
    $region44: #{tpu_custom_call.1} parent=1 // pred_region
      %85 = dma.done [#allocation9], 256
    $region45: #{tpu_custom_call.1} parent=1 // pred_fallthru
      _
    %v87 = vld [vmem:[#allocation2] sm:$0xff]
    %v88 = vpack.c.bf16 %v87, %v87
    %v89 = vld [vmem:[#allocation5] sm:$0xf]
    %v90 = vld [vmem:[%s2] sm:$0x1]
    %v92 = vperm.slane %v90, 0
    %vm94 = vcmask 64512
    %v96 = vsel %vm94, %v88, 0
    %vm98 = vcmask 1043456
    %v100 = vsel %vm98, %v89, 0
    %102 = vmatpush.bf16.msra.mxu0 0
    %103 = vmatpush.bf16.msra.mxu0 0
    %104 = vmatpush.bf16.msra.mxu0 0
    %105 = vmatpush.bf16.msra.mxu0 0
    %106 = vmatpush.bf16.msra.mxu0 0
    %107 = vmatpush.bf16.msra.mxu0 0
    %108 = vmatpush.bf16.msra.mxu0 0
    %109 = vmatpush.bf16.msra.mxu0 %v100
    %110 = vmatmul.bf16.gmra.mxu0 %v96
    %v111 = vpop.f32.mrf.mxu0
    %v112 = vadd.f32 %v92, %v111
    %v113 = vpop.f32.mrf.mxu0
    %114 = vdwg.mxu0
    %v115 = vmax.f32 %v112, 0.0
    %v116 = vpack.c.bf16 %v115, %v115
    %v117 = vld [vmem:[#allocation7] sm:$0xf]
    %v118 = vld [vmem:[#allocation7 + $0x4] sm:$0xf]
    %v119 = vld [vmem:[#allocation7 + $0x8] sm:$0xf]
    %v120 = vld [vmem:[#allocation7 + $0xc] sm:$0xf]
    %v121 = vld [vmem:[%s4] sm:$0x1]
    %v123 = vperm.slane %v121, 0
    %v129 = vunpack.c.l.b16 %v117
    %v130 = vunpack.c.l.b16 %v118
    %v131 = vunpack.c.l.b16 %v119
    %v132 = vunpack.c.l.b16 %v120
    %v133 = vpack.c.b16 %v130, %v129
    %v134 = vpack.c.b16 %v132, %v131
    %vm137 = vcmask 261120
    %v139 = vsel %vm137, %v116, 0
    %141 = vmatpush.bf16.msra.mxu0 0
    %142 = vmatpush.bf16.msra.mxu0 0
    %143 = vmatpush.bf16.msra.mxu0 0
    %144 = vmatpush.bf16.msra.mxu0 0
    %145 = vmatpush.bf16.msra.mxu0 0
    %146 = vmatpush.bf16.msra.mxu0 0
    %147 = vmatpush.bf16.msra.mxu0 %v134
    %148 = vmatpush.bf16.msra.mxu0 %v133
    %149 = vmatmul.bf16.gmra.mxu0 %v139
    %v150 = vpop.f32.mrf.mxu0
    %v151 = vadd.f32 %v123, %v150
    %v152 = vpop.f32.mrf.mxu0
    %153 = vdwg.mxu0
    %v154 = vpack.c.bf16 %v151, %v151
    %v155 = vld [vmem:[#allocation8] sm:$0xf]
    %v156 = vld [vmem:[#allocation8 + $0x4] sm:$0xf]
    %v157 = vld [vmem:[#allocation8 + $0x8] sm:$0xf]
    %v158 = vld [vmem:[#allocation8 + $0xc] sm:$0xf]
    %v159 = vld [vmem:[%s6] sm:$0x1]
    %v161 = vperm.slane %v159, 0
    %v167 = vunpack.c.l.b16 %v155
    %v168 = vunpack.c.l.b16 %v156
    %v169 = vunpack.c.l.b16 %v157
    %v170 = vunpack.c.l.b16 %v158
    %v171 = vpack.c.b16 %v168, %v167
    %v172 = vpack.c.b16 %v170, %v169
    %v176 = vsel %vm137, %v154, 0
    %178 = vmatpush.bf16.msra.mxu0 0
    %179 = vmatpush.bf16.msra.mxu0 0
    %180 = vmatpush.bf16.msra.mxu0 0
    %181 = vmatpush.bf16.msra.mxu0 0
    %182 = vmatpush.bf16.msra.mxu0 0
    %183 = vmatpush.bf16.msra.mxu0 0
    %184 = vmatpush.bf16.msra.mxu0 %v172
    %185 = vmatpush.bf16.msra.mxu0 %v171
    %186 = vmatmul.bf16.gmra.mxu0 %v176
    %v187 = vpop.f32.mrf.mxu0
    %v188 = vadd.f32 %v161, %v187
    %v189 = vpop.f32.mrf.mxu0
    %190 = vdwg.mxu0
    %v191 = vlaneseq
    %v192 = vand.u32 %v191, 127
    %vm193 = vcmp.lt.s32.totalorder %v192, 4
    %v194 = vxor.u32 %v188, 2147483648
    %v195 = vmul.f32 %v194, 1.442695
    %v196 = vpow.pop %v195
    %v197 = vadd.f32 %v196, 1.0
    %v198 = vrcp.pop %v197
    %v199 = vmul.f32 %v197, %v198
    %v200 = vsub.f32 1.0, %v199
    %v201 = vmul.f32 %v198, %v200
    %v202 = vadd.f32 %v198, %v201
    %vm203 = vweird.f32 %v197
    %vm204 = vweird.f32 %v198
    %vm205 = vmor %vm203, %vm204
    %v206 = vsel %vm205, %v198, %v202
    %v207 = vand.u32 2147483647, %v197
    %vm208 = vcmp.eq.f32.partialorder %v207, 8.507059e+37
    %v209 = vand.u32 %v197, 2147483648
    %v210 = vor.u32 1.1754944e-38, %v209
    %v211 = vsel %vm208, %v210, %v206
    %v212 = vmul.f32 1.0, %v211
    %v213 = vsel %vm193, %v212, %v188
    %214 = vst [vmem:[#allocation10] sm:$0xff] %v213
    // Predicated region
    $region46: #{tpu_custom_call.1} parent=1 // pred_check
      _
    $region47: #{tpu_custom_call.1} parent=1 // pred_check_branch
      %216 = sbr.rel (0) target = $region49
    $region48: #{tpu_custom_call.1} parent=1 // pred_region
      %218 = vsyncadd [#allocation4], 0
      %s220 = sshll.u32 [#allocation10], 4
      %s221 = int_to_ptr.vmem [resolvable:$true] %s220
      %s222 = sshll.u32 %s7, 4
      %s223 = int_to_ptr.hbm [resolvable:$true] %s222
      %225 = dma.vmem_to_hbm [thread:$0]  %s221, 128, %s223, [#allocation4]
    $region49: #{tpu_custom_call.1} parent=1 // pred_fallthru
      _
    // Predicated region
    $region50: #{tpu_custom_call.1} parent=1 // pred_check
      _
    $region51: #{tpu_custom_call.1} parent=1 // pred_check_branch
      %227 = sbr.rel (0) target = $region53
    $region52: #{tpu_custom_call.1} parent=1 // pred_region
      %229 = dma.done [#allocation4], 128
    $region53: #{tpu_custom_call.1} parent=1 // pred_fallthru
      _
    %230 = vsyncpa [#allocation3], 1
    %231 = vsyncpa [#allocation6], 1
    %232 = vsyncpa [#allocation9], 1
    %233 = vsyncpa [#allocation4], 1

</llo_original>
